<compile_context>
chip_gen: v6e
topology: v6e:2x2x1
jax: 0.10.0
libtpu: 0.0.40
codegen_flags: <defaults>
</compile_context>

<pallas_src>
import jax
import jax.numpy as jnp
from jax.experimental import pallas as pl
from jax.experimental.pallas import tpu as pltpu


# ---------------------------------------------------------------------------
# Hardware / budgeting helpers (trace-time only, pure Python ints).
# ---------------------------------------------------------------------------

def _round_up(x, m):
    return ((x + m - 1) // m) * m


def _vmem_capacity_bytes():
    try:
        info = pltpu.get_tpu_info()
        cap = getattr(info, "vmem_capacity_bytes", None)
        if cap:
            return int(cap)
    except Exception:
        pass
    return 64 << 20  # conservative fallback: v7x physical VMEM per TensorCore


def _vmem_limit_bytes():
    phys = _vmem_capacity_bytes()
    # 3/4 of physical, capped at 96 MiB, never below the 32 MiB scoped default:
    #   v5e/v6e (128 MiB) -> 96 MiB, v7x (64 MiB) -> 48 MiB.
    return max(32 << 20, min(phys * 3 // 4, 96 << 20))


def _choose_hw_tile(hw, c, block_budget_bytes, min_tiles):
    """Pick a lane-dense spatial tile T (multiple of 128) by byte budget."""
    bytes_per_col = 4 * c                         # one f32 column of a (C, T) tile
    target_t = (2 << 20) // bytes_per_col         # ~2 MiB x-blocks amortize step cost
    max_t = block_budget_bytes // (6 * bytes_per_col)  # 2x in + 2x out + temporaries
    t = max(128, (min(target_t, max_t) // 128) * 128)
    hw_pad = _round_up(hw, 128)
    t = min(t, hw_pad)
    if min_tiles > 1 and hw_pad > 128:
        # Make sure the HW axis yields at least `min_tiles` grid points
        # (keeps both v7x TensorCores busy when N == 1).
        t = min(t, max(128, _round_up(pl.cdiv(hw, min_tiles), 128)))
    return t


# ---------------------------------------------------------------------------
# Kernels.
# ---------------------------------------------------------------------------

def _fused_kernel(x_ref, w1_ref, b1_ref, w2_ref, b2_ref, w3_ref, b3_ref, o_ref):
    """Single pass per batch element: mean + gate + gated conv1, all in VMEM.

    Blocks:
      x_ref / o_ref : (1, C, HW)  full per-batch slab (C on sublanes, HW on lanes)
      wi_ref        : (C, C)      conv weights as stored by PyTorch (Cout, Cin)
      bi_ref        : (C, 1)
    """
    x = x_ref[0]                                                       # (C, HW)
    w1 = w1_ref[...]                                                   # (C, C)
    b1 = b1_ref[...]                                                   # (C, 1)

    # Global average pool folded through the 1x1 conv (exact for avg pool):
    #   mean_HW(W1 @ x + b1) == W1 @ mean_HW(x) + b1
    mx = jnp.mean(x, axis=1, keepdims=True)                            # (C, 1)
    gp = jnp.dot(w1, mx, preferred_element_type=jnp.float32) + b1      # (C, 1)

    # Squeeze/excite gate -- runs once per batch element (not per tile).
    r = jnp.maximum(
        jnp.dot(w2_ref[...], gp, preferred_element_type=jnp.float32) + b2_ref[...],
        0.0)                                                           # (C, 1)
    s = jax.nn.sigmoid(
        jnp.dot(w3_ref[...], r, preferred_element_type=jnp.float32) + b3_ref[...])

    # out = s * conv1(x); c1 never hits HBM.
    y = jnp.dot(w1, x, preferred_element_type=jnp.float32) + b1        # (C, HW)
    o_ref[0] = (s * y).astype(o_ref.dtype)


def _tiled_kernel(s_ref, x_ref, w1_ref, b1_ref, o_ref):
    """Spatially tiled gated conv1; the gate s is precomputed in the wrapper.

    Blocks:
      s_ref  : (1, C, 1)  sigmoid gate for this batch element (f32)
      x_ref  : (1, C, T)  spatial tile, T a multiple of 128 (lane-dense stores)
      w1_ref : (C, C), b1_ref : (C, 1)
      o_ref  : (1, C, T)
    """
    y = jnp.dot(w1_ref[...], x_ref[0],
                preferred_element_type=jnp.float32) + b1_ref[...]      # (C, T)
    o_ref[0] = (s_ref[0] * y).astype(o_ref.dtype)


# ---------------------------------------------------------------------------
# Wrapper.
# ---------------------------------------------------------------------------

@jax.jit
def weight_block(x_nchw, w1, b1, w2, b2, w3, b3):
    """x_nchw: (N, C, H, W). wi: (C, C) 1x1-conv weights; bi: (C,) biases."""
    N, C, H, W = x_nchw.shape
    HW = H * W
    dtype = x_nchw.dtype
    itemsize = 4  # f32 path

    x = x_nchw.reshape(N, C, HW)          # pure reshape, no transpose
    b1c = b1.reshape(C, 1)
    b2c = b2.reshape(C, 1)
    b3c = b3.reshape(C, 1)

    vmem_limit = _vmem_limit_bytes()
    plan_budget = vmem_limit - (8 << 20)  # headroom for compiler scratch / sems

    # --- Path selection (static, shape-based) -------------------------------
    slab = C * HW * itemsize
    fused_cost = 6 * slab + 2 * 3 * C * C * itemsize   # in/out dbl-buf + temps + weights
    use_fused = (N >= 2) and (fused_cost <= plan_budget)

    if use_fused:
        out = pl.pallas_call(
            _fused_kernel,
            out_shape=jax.ShapeDtypeStruct((N, C, HW), dtype),
            grid_spec=pltpu.PrefetchScalarGridSpec(
                num_scalar_prefetch=0,
                grid=(N,),
                in_specs=[
                    pl.BlockSpec((1, C, HW), lambda n: (n, 0, 0)),   # x slab
                    pl.BlockSpec((C, C), lambda n: (0, 0)),          # w1
                    pl.BlockSpec((C, 1), lambda n: (0, 0)),          # b1
                    pl.BlockSpec((C, C), lambda n: (0, 0)),          # w2
                    pl.BlockSpec((C, 1), lambda n: (0, 0)),          # b2
                    pl.BlockSpec((C, C), lambda n: (0, 0)),          # w3
                    pl.BlockSpec((C, 1), lambda n: (0, 0)),          # b3
                ],
                out_specs=pl.BlockSpec((1, C, HW), lambda n: (n, 0, 0)),
            ),
            compiler_params=pltpu.CompilerParams(
                dimension_semantics=("parallel",),
                vmem_limit_bytes=vmem_limit),
        )(x, w1, b1c, w2, b2c, w3, b3c)
        return out.reshape(N, C, H, W)

    # --- Tiled two-pass path -------------------------------------------------
    # Gate hoisted out of the per-tile body: tiny (N, C) XLA work in f32.
    mx = jnp.mean(x.astype(jnp.float32), axis=2)                     # (N, C)
    gp = mx @ w1.astype(jnp.float32).T + b1.astype(jnp.float32)[None, :]
    r = jax.nn.relu(gp @ w2.astype(jnp.float32).T + b2.astype(jnp.float32)[None, :])
    s = jax.nn.sigmoid(r @ w3.astype(jnp.float32).T + b3.astype(jnp.float32)[None, :])
    s = s.reshape(N, C, 1)                                           # (N, C, 1), f32

    # Budget for the x/out blocks: subtract the double-buffered w1/b1/s blocks.
    reserved = 2 * C * C * itemsize + 4 * (2 * C * itemsize)
    block_budget = max(plan_budget - reserved, 6 * 128 * C * itemsize)
    min_tiles = 2 if N == 1 else 1
    T = _choose_hw_tile(HW, C, block_budget, min_tiles)
    grid = (N, pl.cdiv(HW, T))            # ragged last HW block is handled by Pallas

    out = pl.pallas_call(
        _tiled_kernel,
        out_shape=jax.ShapeDtypeStruct((N, C, HW), dtype),
        grid_spec=pltpu.PrefetchScalarGridSpec(
            num_scalar_prefetch=0,
            grid=grid,
            in_specs=[
                pl.BlockSpec((1, C, 1), lambda n, t: (n, 0, 0)),     # gate s
                pl.BlockSpec((1, C, T), lambda n, t: (n, 0, t)),     # x tile
                pl.BlockSpec((C, C), lambda n, t: (0, 0)),           # w1
                pl.BlockSpec((C, 1), lambda n, t: (0, 0)),           # b1
            ],
            out_specs=pl.BlockSpec((1, C, T), lambda n, t: (n, 0, t)),
        ),
        compiler_params=pltpu.CompilerParams(
            dimension_semantics=("parallel", "parallel"),
            vmem_limit_bytes=vmem_limit),
    )(s, x, w1, b1c)
    return out.reshape(N, C, H, W)


# ---------------------------------------------------------------------------
# Pure-JAX reference (matches the PyTorch module).
# ---------------------------------------------------------------------------

def weight_block_ref(x_nchw, w1, b1, w2, b2, w3, b3):
    def conv1x1(x, w, b):
        return jnp.einsum('nchw,oc->nohw', x, w) + b[None, :, None, None]

    c1 = conv1x1(x_nchw, w1, b1)
    gp = jnp.mean(c1, axis=(2, 3), keepdims=True)
    r = jax.nn.relu(conv1x1(gp, w2, b2))
    s = jax.nn.sigmoid(conv1x1(r, w3, b3))
    return s * c1


if __name__ == "__main__":
    key = jax.random.PRNGKey(0)

    def make_params(k, C):
        ks = jax.random.split(k, 6)
        scale = 1.0 / jnp.sqrt(jnp.float32(C))
        return (jax.random.normal(ks[0], (C, C), jnp.float32) * scale,
                jax.random.normal(ks[1], (C,), jnp.float32) * 0.1,
                jax.random.normal(ks[2], (C, C), jnp.float32) * scale,
                jax.random.normal(ks[3], (C,), jnp.float32) * 0.1,
                jax.random.normal(ks[4], (C, C), jnp.float32) * scale,
                jax.random.normal(ks[5], (C,), jnp.float32) * 0.1)

    k0, k1, k2, k3 = jax.random.split(key, 4)
    C = 8

    # Case 1: fused single-pass path (N >= 2, per-batch slab fits VMEM).
    x1 = jax.random.normal(k0, (2, C, 16, 16), jnp.float32)
    p1 = make_params(k1, C)
    out1 = jax.block_until_ready(weight_block(x1, *p1))
    ref1 = jax.block_until_ready(weight_block_ref(x1, *p1))
    assert out1.shape == x1.shape
    err1 = float(jnp.max(jnp.abs(out1 - ref1)))
    assert jnp.allclose(out1, ref1, atol=1e-4, rtol=1e-4), f"fused max err {err1}"

    # Case 2: tiled two-pass path (N == 1 forces an HW split; 13x13 = 169
    # exercises the ragged last lane block, T = 128).
    x2 = jax.random.normal(k2, (1, C, 13, 13), jnp.float32)
    p2 = make_params(k3, C)
    out2 = jax.block_until_ready(weight_block(x2, *p2))
    ref2 = jax.block_until_ready(weight_block_ref(x2, *p2))
    assert out2.shape == x2.shape
    err2 = float(jnp.max(jnp.abs(out2 - ref2)))
    assert jnp.allclose(out2, ref2, atol=1e-4, rtol=1e-4), f"tiled max err {err2}"

    print("KERNEL_OK")
</pallas_src>

<mosaic_0001>
module attributes {stable_mosaic.version = 11 : i64} {
  func.func @_fused_kernel(%arg0: i32, %arg1: memref<1x8x256xf32, #tpu.memory_space<vmem>>, %arg2: memref<8x8xf32, #tpu.memory_space<vmem>>, %arg3: memref<8x1xf32, #tpu.memory_space<vmem>>, %arg4: memref<8x8xf32, #tpu.memory_space<vmem>>, %arg5: memref<8x1xf32, #tpu.memory_space<vmem>>, %arg6: memref<8x8xf32, #tpu.memory_space<vmem>>, %arg7: memref<8x1xf32, #tpu.memory_space<vmem>>, %arg8: memref<1x8x256xf32, #tpu.memory_space<vmem>>) attributes {dimension_semantics = [#tpu.dimension_semantics<parallel>], iteration_bounds = array<i64: 2>, scalar_prefetch = 0 : i64, scratch_operands = 0 : i64, tpu.core_type = #tpu.core_type<tc>, window_params = [{transform_indices = @transform_0, window_bounds = array<i64: 1, 8, 256>}, {pipeline_mode = #tpu.pipeline_mode<synchronous>, transform_indices = @transform_1, window_bounds = array<i64: 8, 8>}, {pipeline_mode = #tpu.pipeline_mode<synchronous>, transform_indices = @transform_2, window_bounds = array<i64: 8, 1>}, {pipeline_mode = #tpu.pipeline_mode<synchronous>, transform_indices = @transform_3, window_bounds = array<i64: 8, 8>}, {pipeline_mode = #tpu.pipeline_mode<synchronous>, transform_indices = @transform_4, window_bounds = array<i64: 8, 1>}, {pipeline_mode = #tpu.pipeline_mode<synchronous>, transform_indices = @transform_5, window_bounds = array<i64: 8, 8>}, {pipeline_mode = #tpu.pipeline_mode<synchronous>, transform_indices = @transform_6, window_bounds = array<i64: 8, 1>}, {transform_indices = @transform_7, window_bounds = array<i64: 1, 8, 256>}]} {
    %c0 = arith.constant 0 : index
    %c0_0 = arith.constant 0 : index
    %c0_1 = arith.constant 0 : index
    %0 = vector.load %arg1[%c0, %c0_0, %c0_1] : memref<1x8x256xf32, #tpu.memory_space<vmem>>, vector<1x8x256xf32>
    %1 = vector.shape_cast %0 : vector<1x8x256xf32> to vector<8x256xf32>
    %c0_2 = arith.constant 0 : index
    %c0_3 = arith.constant 0 : index
    %2 = vector.load %arg2[%c0_2, %c0_3] : memref<8x8xf32, #tpu.memory_space<vmem>>, vector<8x8xf32>
    %c0_4 = arith.constant 0 : index
    %c0_5 = arith.constant 0 : index
    %3 = vector.load %arg3[%c0_4, %c0_5] : memref<8x1xf32, #tpu.memory_space<vmem>>, vector<8x1xf32>
    %cst = arith.constant dense<0.000000e+00> : vector<8xf32>
    %4 = vector.multi_reduction <add>, %1, %cst [1] : vector<8x256xf32> to vector<8xf32>
    %5 = vector.shape_cast %4 : vector<8xf32> to vector<8x1xf32>
    %cst_6 = arith.constant 2.560000e+02 : f32
    %6 = vector.broadcast %cst_6 : f32 to vector<8x1xf32>
    %7 = arith.divf %5, %6 : vector<8x1xf32>
    %cst_7 = arith.constant dense<0.000000e+00> : vector<8x1xf32>
    %8 = tpu.matmul %2, %7, %cst_7 {dimension_numbers = #tpu.dot_dimension_numbers<[1], [0], [0], [1], [0, 0, 1, 1], [], []>} : vector<8x8xf32>, vector<8x1xf32>, vector<8x1xf32> -> vector<8x1xf32>
    %9 = arith.addf %8, %3 : vector<8x1xf32>
    %c0_8 = arith.constant 0 : index
    %c0_9 = arith.constant 0 : index
    %10 = vector.load %arg4[%c0_8, %c0_9] : memref<8x8xf32, #tpu.memory_space<vmem>>, vector<8x8xf32>
    %cst_10 = arith.constant dense<0.000000e+00> : vector<8x1xf32>
    %11 = tpu.matmul %10, %9, %cst_10 {dimension_numbers = #tpu.dot_dimension_numbers<[1], [0], [0], [1], [0, 0, 1, 1], [], []>} : vector<8x8xf32>, vector<8x1xf32>, vector<8x1xf32> -> vector<8x1xf32>
    %c0_11 = arith.constant 0 : index
    %c0_12 = arith.constant 0 : index
    %12 = vector.load %arg5[%c0_11, %c0_12] : memref<8x1xf32, #tpu.memory_space<vmem>>, vector<8x1xf32>
    %13 = arith.addf %11, %12 : vector<8x1xf32>
    %cst_13 = arith.constant 0.000000e+00 : f32
    %14 = vector.broadcast %cst_13 : f32 to vector<8x1xf32>
    %15 = arith.maximumf %13, %14 : vector<8x1xf32>
    %c0_14 = arith.constant 0 : index
    %c0_15 = arith.constant 0 : index
    %16 = vector.load %arg6[%c0_14, %c0_15] : memref<8x8xf32, #tpu.memory_space<vmem>>, vector<8x8xf32>
    %cst_16 = arith.constant dense<0.000000e+00> : vector<8x1xf32>
    %17 = tpu.matmul %16, %15, %cst_16 {dimension_numbers = #tpu.dot_dimension_numbers<[1], [0], [0], [1], [0, 0, 1, 1], [], []>} : vector<8x8xf32>, vector<8x1xf32>, vector<8x1xf32> -> vector<8x1xf32>
    %c0_17 = arith.constant 0 : index
    %c0_18 = arith.constant 0 : index
    %18 = vector.load %arg7[%c0_17, %c0_18] : memref<8x1xf32, #tpu.memory_space<vmem>>, vector<8x1xf32>
    %19 = arith.addf %17, %18 : vector<8x1xf32>
    %20 = arith.negf %19 : vector<8x1xf32>
    %21 = math.exp %20 : vector<8x1xf32>
    %cst_19 = arith.constant 1.000000e+00 : f32
    %22 = vector.broadcast %cst_19 : f32 to vector<8x1xf32>
    %23 = arith.addf %22, %21 : vector<8x1xf32>
    %24 = arith.divf %22, %23 : vector<8x1xf32>
    %cst_20 = arith.constant dense<0.000000e+00> : vector<8x256xf32>
    %25 = tpu.matmul %2, %1, %cst_20 {dimension_numbers = #tpu.dot_dimension_numbers<[1], [0], [0], [1], [0, 0, 1, 1], [], []>} : vector<8x8xf32>, vector<8x256xf32>, vector<8x256xf32> -> vector<8x256xf32>
    %26 = vector.broadcast %3 : vector<8x1xf32> to vector<8x256xf32>
    %27 = arith.addf %25, %26 : vector<8x256xf32>
    %28 = vector.broadcast %24 : vector<8x1xf32> to vector<8x256xf32>
    %29 = arith.mulf %28, %27 : vector<8x256xf32>
    %c0_21 = arith.constant 0 : index
    %c0_22 = arith.constant 0 : index
    %c0_23 = arith.constant 0 : index
    %30 = vector.load %arg8[%c0_21, %c0_22, %c0_23] : memref<1x8x256xf32, #tpu.memory_space<vmem>>, vector<1x8x256xf32>
    %31 = vector.shape_cast %30 : vector<1x8x256xf32> to vector<8x256xf32>
    %32 = vector.shape_cast %29 : vector<8x256xf32> to vector<1x8x256xf32>
    tpu.vector_store %arg8[%c0_21, %c0_22, %c0_23], %32 {strides = array<i32>} : memref<1x8x256xf32, #tpu.memory_space<vmem>>, vector<1x8x256xf32>,
    return
  }
  func.func @transform_0(%arg0: i32) -> (i32, i32, i32) {
    %c0_i32 = arith.constant 0 : i32
    %c0_i32_0 = arith.constant 0 : i32
    %c0_i32_1 = arith.constant 0 : i32
    return %arg0, %c0_i32, %c0_i32_0 : i32, i32, i32
  }
  func.func @transform_1(%arg0: i32) -> (i32, i32) {
    %c0_i32 = arith.constant 0 : i32
    %c0_i32_0 = arith.constant 0 : i32
    %c0_i32_1 = arith.constant 0 : i32
    return %c0_i32, %c0_i32_0 : i32, i32
  }
  func.func @transform_2(%arg0: i32) -> (i32, i32) {
    %c0_i32 = arith.constant 0 : i32
    %c0_i32_0 = arith.constant 0 : i32
    %c0_i32_1 = arith.constant 0 : i32
    return %c0_i32, %c0_i32_0 : i32, i32
  }
  func.func @transform_3(%arg0: i32) -> (i32, i32) {
    %c0_i32 = arith.constant 0 : i32
    %c0_i32_0 = arith.constant 0 : i32
    %c0_i32_1 = arith.constant 0 : i32
    return %c0_i32, %c0_i32_0 : i32, i32
  }
  func.func @transform_4(%arg0: i32) -> (i32, i32) {
    %c0_i32 = arith.constant 0 : i32
    %c0_i32_0 = arith.constant 0 : i32
    %c0_i32_1 = arith.constant 0 : i32
    return %c0_i32, %c0_i32_0 : i32, i32
  }
  func.func @transform_5(%arg0: i32) -> (i32, i32) {
    %c0_i32 = arith.constant 0 : i32
    %c0_i32_0 = arith.constant 0 : i32
    %c0_i32_1 = arith.constant 0 : i32
    return %c0_i32, %c0_i32_0 : i32, i32
  }
  func.func @transform_6(%arg0: i32) -> (i32, i32) {
    %c0_i32 = arith.constant 0 : i32
    %c0_i32_0 = arith.constant 0 : i32
    %c0_i32_1 = arith.constant 0 : i32
    return %c0_i32, %c0_i32_0 : i32, i32
  }
  func.func @transform_7(%arg0: i32) -> (i32, i32, i32) {
    %c0_i32 = arith.constant 0 : i32
    %c0_i32_0 = arith.constant 0 : i32
    %c0_i32_1 = arith.constant 0 : i32
    return %arg0, %c0_i32, %c0_i32_0 : i32, i32, i32
  }
}

</mosaic_0001>

<llo_original>
// kernel: weight_block.1
$region0: #{weight_block.1}
  #allocation0 [shape = 'u32[]', space=smem, size = 0x4, offset = 0x4, fixed_abs, tag = 'smem constant byte address 0x4 - core index']
  #allocation1 [shape = 'u32[144,128]{1,0:T(1,128)}', space=vmem, size = 0x12000, scoped, tag = 'internal scratch']
  %s0 = inlined_call_operand.vmem [shape: f32[2,8,256], index: 0, kind: input, shape index: {}]
  %s1 = inlined_call_operand.vmem [shape: f32[8,8], index: 1, kind: input, shape index: {}]
  %s2 = inlined_call_operand.vmem [shape: f32[8,1], index: 2, kind: input, shape index: {}]
  %s3 = inlined_call_operand.vmem [shape: f32[8,8], index: 3, kind: input, shape index: {}]
  %s4 = inlined_call_operand.vmem [shape: f32[8,1], index: 4, kind: input, shape index: {}]
  %s5 = inlined_call_operand.vmem [shape: f32[8,8], index: 5, kind: input, shape index: {}]
  %s6 = inlined_call_operand.vmem [shape: f32[8,1], index: 6, kind: input, shape index: {}]
  %s7 = inlined_call_operand.vmem [shape: f32[2,8,256], index: 7, kind: output, shape index: {}]
  %s8 = sld [smem:[#allocation0]]
  $region61: #{weight_block.1} parent=0
    _
  %s10 = ssub.s32 1, %s8
  %s11 = scalar_select 0, %s10, %s8
  loop: start=0, step=1, limit=4
  $region2: #{weight_block.1} parent=0 // loop_pre_header
    _
  $region3: #{weight_block.1} parent=0 // loop_header
    %s13 = sphi 0, %s17
    %p14 = scmp.ge.s32.totalorder %s13, 4
    %s23 = sphi 0, %s25
    %s26 = sphi 0, %s23
    %s27 = sphi 0, %s26
    %s43 = sphi 0, %s27
    %s47 = sphi 0, %s47
    %s49 = sphi 0, %s47
    %s50 = sphi 0, %s49
    %s64 = sphi 0, %s50
    %s68 = sphi 0, %s68
    %s70 = sphi 0, %s68
    %s71 = sphi 0, %s70
    %s85 = sphi 0, %s71
    %s89 = sphi 0, %s89
    %s91 = sphi 0, %s89
    %s92 = sphi 0, %s91
    %s106 = sphi 0, %s92
    %s110 = sphi 0, %s110
    %s112 = sphi 0, %s110
    %s113 = sphi 0, %s112
    %s127 = sphi 0, %s113
    %s131 = sphi 0, %s131
    %s133 = sphi 0, %s131
    %s134 = sphi 0, %s133
    %s148 = sphi 0, %s134
    %s152 = sphi 0, %s152
    %s154 = sphi 0, %s152
    %s155 = sphi 0, %s154
    %s169 = sphi 0, %s155
    %s175 = sphi 0, %s177
    %s178 = sphi 0, %s175
    %s179 = sphi 0, %s178
    %s195 = sphi 0, %s179
  $region4: #{weight_block.1} parent=0 // loop_header_branch
    %16 = sbr.rel (%p14) target = $region8
  $region5: #{weight_block.1} parent=0 // loop_body
    %s18 = ssub.s32 %s13, 1
    %s19 = ssub.s32 %s13, 2
    %s20 = sadd.s32 %s13, 1
    %s21 = ssub.s32 %s13, %s20
    %p22 = scmp.eq.s32.totalorder %s21, 0
    %s24 = sadd.s32 %s23, 1
    %s25 = scalar_select %p22, %s23, %s24
    %p28 = pneg %p22
    %p29 = scmp.eq.s32.totalorder %s13, 1
    %p30 = por %p28, %p29
    %p31 = scmp.ne.s32.totalorder %s23, %s26
    %p32 = scmp.eq.s32.totalorder %s13, 0
    %p33 = por %p31, %p32
    %p34 = scmp.ne.s32.totalorder %s23, %s26
    %p35 = scmp.eq.s32.totalorder %s18, 1
    %p36 = por %p34, %p35
    %p37 = scmp.ne.s32.totalorder %s26, %s27
    %p38 = scmp.eq.s32.totalorder %s18, 0
    %p39 = por %p37, %p38
    %p40 = scmp.ne.s32.totalorder %s26, %s27
    %p41 = scmp.eq.s32.totalorder %s19, 1
    %p42 = por %p40, %p41
    %p44 = scmp.ne.s32.totalorder %s27, %s43
    %p45 = scmp.eq.s32.totalorder %s19, 0
    %p46 = por %p44, %p45
    %s48 = sadd.s32 %s47, 1
    %p51 = scmp.eq.s32.totalorder %s13, 1
    %p52 = scmp.ne.s32.totalorder %s47, %s49
    %p53 = scmp.eq.s32.totalorder %s13, 0
    %p54 = por %p52, %p53
    %p55 = scmp.ne.s32.totalorder %s47, %s49
    %p56 = scmp.eq.s32.totalorder %s18, 1
    %p57 = por %p55, %p56
    %p58 = scmp.ne.s32.totalorder %s49, %s50
    %p59 = scmp.eq.s32.totalorder %s18, 0
    %p60 = por %p58, %p59
    %p61 = scmp.ne.s32.totalorder %s49, %s50
    %p62 = scmp.eq.s32.totalorder %s19, 1
    %p63 = por %p61, %p62
    %p65 = scmp.ne.s32.totalorder %s50, %s64
    %p66 = scmp.eq.s32.totalorder %s19, 0
    %p67 = por %p65, %p66
    %s69 = sadd.s32 %s68, 1
    %p72 = scmp.eq.s32.totalorder %s13, 1
    %p73 = scmp.ne.s32.totalorder %s68, %s70
    %p74 = scmp.eq.s32.totalorder %s13, 0
    %p75 = por %p73, %p74
    %p76 = scmp.ne.s32.totalorder %s68, %s70
    %p77 = scmp.eq.s32.totalorder %s18, 1
    %p78 = por %p76, %p77
    %p79 = scmp.ne.s32.totalorder %s70, %s71
    %p80 = scmp.eq.s32.totalorder %s18, 0
    %p81 = por %p79, %p80
    %p82 = scmp.ne.s32.totalorder %s70, %s71
    %p83 = scmp.eq.s32.totalorder %s19, 1
    %p84 = por %p82, %p83
    %p86 = scmp.ne.s32.totalorder %s71, %s85
    %p87 = scmp.eq.s32.totalorder %s19, 0
    %p88 = por %p86, %p87
    %s90 = sadd.s32 %s89, 1
    %p93 = scmp.eq.s32.totalorder %s13, 1
    %p94 = scmp.ne.s32.totalorder %s89, %s91
    %p95 = scmp.eq.s32.totalorder %s13, 0
    %p96 = por %p94, %p95
    %p97 = scmp.ne.s32.totalorder %s89, %s91
    %p98 = scmp.eq.s32.totalorder %s18, 1
    %p99 = por %p97, %p98
    %p100 = scmp.ne.s32.totalorder %s91, %s92
    %p101 = scmp.eq.s32.totalorder %s18, 0
    %p102 = por %p100, %p101
    %p103 = scmp.ne.s32.totalorder %s91, %s92
    %p104 = scmp.eq.s32.totalorder %s19, 1
    %p105 = por %p103, %p104
    %p107 = scmp.ne.s32.totalorder %s92, %s106
    %p108 = scmp.eq.s32.totalorder %s19, 0
    %p109 = por %p107, %p108
    %s111 = sadd.s32 %s110, 1
    %p114 = scmp.eq.s32.totalorder %s13, 1
    %p115 = scmp.ne.s32.totalorder %s110, %s112
    %p116 = scmp.eq.s32.totalorder %s13, 0
    %p117 = por %p115, %p116
    %p118 = scmp.ne.s32.totalorder %s110, %s112
    %p119 = scmp.eq.s32.totalorder %s18, 1
    %p120 = por %p118, %p119
    %p121 = scmp.ne.s32.totalorder %s112, %s113
    %p122 = scmp.eq.s32.totalorder %s18, 0
    %p123 = por %p121, %p122
    %p124 = scmp.ne.s32.totalorder %s112, %s113
    %p125 = scmp.eq.s32.totalorder %s19, 1
    %p126 = por %p124, %p125
    %p128 = scmp.ne.s32.totalorder %s113, %s127
    %p129 = scmp.eq.s32.totalorder %s19, 0
    %p130 = por %p128, %p129
    %s132 = sadd.s32 %s131, 1
    %p135 = scmp.eq.s32.totalorder %s13, 1
    %p136 = scmp.ne.s32.totalorder %s131, %s133
    %p137 = scmp.eq.s32.totalorder %s13, 0
    %p138 = por %p136, %p137
    %p139 = scmp.ne.s32.totalorder %s131, %s133
    %p140 = scmp.eq.s32.totalorder %s18, 1
    %p141 = por %p139, %p140
    %p142 = scmp.ne.s32.totalorder %s133, %s134
    %p143 = scmp.eq.s32.totalorder %s18, 0
    %p144 = por %p142, %p143
    %p145 = scmp.ne.s32.totalorder %s133, %s134
    %p146 = scmp.eq.s32.totalorder %s19, 1
    %p147 = por %p145, %p146
    %p149 = scmp.ne.s32.totalorder %s134, %s148
    %p150 = scmp.eq.s32.totalorder %s19, 0
    %p151 = por %p149, %p150
    %s153 = sadd.s32 %s152, 1
    %p156 = scmp.eq.s32.totalorder %s13, 1
    %p157 = scmp.ne.s32.totalorder %s152, %s154
    %p158 = scmp.eq.s32.totalorder %s13, 0
    %p159 = por %p157, %p158
    %p160 = scmp.ne.s32.totalorder %s152, %s154
    %p161 = scmp.eq.s32.totalorder %s18, 1
    %p162 = por %p160, %p161
    %p163 = scmp.ne.s32.totalorder %s154, %s155
    %p164 = scmp.eq.s32.totalorder %s18, 0
    %p165 = por %p163, %p164
    %p166 = scmp.ne.s32.totalorder %s154, %s155
    %p167 = scmp.eq.s32.totalorder %s19, 1
    %p168 = por %p166, %p167
    %p170 = scmp.ne.s32.totalorder %s155, %s169
    %p171 = scmp.eq.s32.totalorder %s19, 0
    %p172 = por %p170, %p171
    %s173 = ssub.s32 %s13, %s20
    %p174 = scmp.eq.s32.totalorder %s173, 0
    %s176 = sadd.s32 %s175, 1
    %s177 = scalar_select %p174, %s175, %s176
    %p180 = pneg %p174
    %p181 = scmp.eq.s32.totalorder %s13, 1
    %p182 = por %p180, %p181
    %p183 = scmp.ne.s32.totalorder %s175, %s178
    %p184 = scmp.eq.s32.totalorder %s13, 0
    %p185 = por %p183, %p184
    %p186 = scmp.ne.s32.totalorder %s175, %s178
    %p187 = scmp.eq.s32.totalorder %s18, 1
    %p188 = por %p186, %p187
    %p189 = scmp.ne.s32.totalorder %s178, %s179
    %p190 = scmp.eq.s32.totalorder %s18, 0
    %p191 = por %p189, %p190
    %p192 = scmp.ne.s32.totalorder %s178, %s179
    %p193 = scmp.eq.s32.totalorder %s19, 1
    %p194 = por %p192, %p193
    %p196 = scmp.ne.s32.totalorder %s179, %s195
    %p197 = scmp.eq.s32.totalorder %s19, 0
    %p198 = por %p196, %p197
    %p199 = scmp.le.s32.totalorder 1, %s13
    %p200 = scmp.lt.s32.totalorder %s13, 3
    %p201 = pnand %p199, %p200
    %p202 = pneg %p201
    // Predicated region
    $region9: #{weight_block.1} parent=5 // pred_check
      _
    $region10: #{weight_block.1} parent=5 // pred_check_branch
      %204 = sbr.rel (%p201) target = $region12
    $region11: #{weight_block.1} parent=5 // pred_region
      %s205 = ssub.s32 %s13, 1
      // Predicated region
      $region13: #{weight_block.1} parent=11 // pred_check
        %p206 = pneg %p60
      $region14: #{weight_block.1} parent=11 // pred_check_branch
        %208 = sbr.rel (%p206) target = $region16
      $region15: #{weight_block.1} parent=11 // pred_region
        _
      $region16: #{weight_block.1} parent=11 // pred_fallthru
        _
      // Predicated region
      $region17: #{weight_block.1} parent=11 // pred_check
        %p209 = pneg %p81
      $region18: #{weight_block.1} parent=11 // pred_check_branch
        %211 = sbr.rel (%p209) target = $region20
      $region19: #{weight_block.1} parent=11 // pred_region
        _
      $region20: #{weight_block.1} parent=11 // pred_fallthru
        _
      // Predicated region
      $region21: #{weight_block.1} parent=11 // pred_check
        %p212 = pneg %p102
      $region22: #{weight_block.1} parent=11 // pred_check_branch
        %214 = sbr.rel (%p212) target = $region24
      $region23: #{weight_block.1} parent=11 // pred_region
        _
      $region24: #{weight_block.1} parent=11 // pred_fallthru
        _
      // Predicated region
      $region25: #{weight_block.1} parent=11 // pred_check
        %p215 = pneg %p123
      $region26: #{weight_block.1} parent=11 // pred_check_branch
        %217 = sbr.rel (%p215) target = $region28
      $region27: #{weight_block.1} parent=11 // pred_region
        _
      $region28: #{weight_block.1} parent=11 // pred_fallthru
        _
      // Predicated region
      $region29: #{weight_block.1} parent=11 // pred_check
        %p218 = pneg %p144
      $region30: #{weight_block.1} parent=11 // pred_check_branch
        %220 = sbr.rel (%p218) target = $region32
      $region31: #{weight_block.1} parent=11 // pred_region
        _
      $region32: #{weight_block.1} parent=11 // pred_fallthru
        _
      // Predicated region
      $region33: #{weight_block.1} parent=11 // pred_check
        %p221 = pneg %p165
      $region34: #{weight_block.1} parent=11 // pred_check_branch
        %223 = sbr.rel (%p221) target = $region36
      $region35: #{weight_block.1} parent=11 // pred_region
        _
      $region36: #{weight_block.1} parent=11 // pred_fallthru
        _
    $region12: #{weight_block.1} parent=5 // pred_fallthru
      _
    %p224 = scmp.lt.s32.totalorder %s13, 2
    // Predicated region
    $region37: #{weight_block.1} parent=5 // pred_check
      %p225 = pneg %p224
    $region38: #{weight_block.1} parent=5 // pred_check_branch
      %227 = sbr.rel (%p225) target = $region40
    $region39: #{weight_block.1} parent=5 // pred_region
      // Predicated region
      $region41: #{weight_block.1} parent=39 // pred_check
        %p228 = pneg %p33
      $region42: #{weight_block.1} parent=39 // pred_check_branch
        %230 = sbr.rel (%p228) target = $region44
      $region43: #{weight_block.1} parent=39 // pred_region
        %p231 = scmp.lt.s32.totalorder %s13, 1
        %s232 = scalar_select %p231, %s13, 1
        %s233 = smul.addr %s232, 2
        %s234 = smul.addr %s233, 8
        %s235 = scalar_lea.vmem %s0, %s234
      $region44: #{weight_block.1} parent=39 // pred_fallthru
        _
    $region40: #{weight_block.1} parent=5 // pred_fallthru
      _
    %p236 = scmp.le.s32.totalorder 1, %s13
    %p237 = scmp.lt.s32.totalorder %s13, 3
    %p238 = pnand %p236, %p237
    %p239 = pneg %p238
    // Predicated region
    $region45: #{weight_block.1} parent=5 // pred_check
      _
    $region46: #{weight_block.1} parent=5 // pred_check_branch
      %241 = sbr.rel (%p238) target = $region48
    $region47: #{weight_block.1} parent=5 // pred_region
      %s242 = ssub.s32 %s13, 1
      %p243 = scmp.lt.s32.totalorder %s18, 1
      %s244 = scalar_select %p243, %s18, 1
      %s245 = smul.addr %s244, 2
      %s246 = smul.addr %s245, 8
      %s247 = scalar_lea.vmem %s0, %s246
      %p248 = pneg %p39
      %p249 = pneg %p36
      %p250 = pneg %p60
      %p251 = pneg %p57
      %p252 = pneg %p81
      %p253 = pneg %p78
      %p254 = pneg %p102
      %p255 = pneg %p99
      %p256 = pneg %p123
      %p257 = pneg %p120
      %p258 = pneg %p144
      %p259 = pneg %p141
      %p260 = pneg %p165
      %p261 = pneg %p162
      %p262 = pneg %p191
      %p263 = pneg %p188
      %p264 = scmp.lt.s32.totalorder %s18, 1
      %s265 = scalar_select %p264, %s18, 1
      %s266 = smul.addr %s265, 2
      %s267 = smul.addr %s266, 8
      %s268 = scalar_lea.vmem %s7, %s267
      %p269 = scmp.lt.s32.totalorder %s18, 1
      %s270 = scalar_select %p269, %s18, 1
      %s271 = smul.addr %s270, 2
      %s272 = smul.addr %s271, 8
      %s273 = scalar_lea.vmem %s0, %s272
      %p274 = scmp.lt.s32.totalorder %s18, 1
      %s275 = scalar_select %p274, %s18, 1
      %s276 = smul.addr %s275, 2
      %s277 = smul.addr %s276, 8
      %s278 = scalar_lea.vmem %s7, %s277
      %v279 = vld [vmem:[%s273] sm:$0xff]
      %v280 = vld [vmem:[%s273 + $0x8] sm:$0xff]
      %v281 = vld [vmem:[%s1] sm:$0xff]
      %v282 = vld [vmem:[%s2] sm:$0xff]
      %v283 = vadd.f32 %v279, %v280
      %284 = vadd.xlane.f32.xlu0 %v283
      %v285 = vpop.xlane.xlu0 %284
      %v286 = vrcp.pop 256.0
      %v287 = vmul.f32 %v285, %v286
      %vm288 = vcmask 64512
      %v290 = vsel %vm288, %v281, 0
      %292 = vmatprep.subr.mxu0 0.0
      %293 = vmatpush1.msra.mxu0 0.0
      %294 = vmatprep.subr.mxu0 0.0
      %295 = vmatpush1.msra.mxu0 0.0
      %296 = vmatprep.subr.mxu0 0.0
      %297 = vmatpush1.msra.mxu0 0.0
      %298 = vmatprep.subr.mxu0 0.0
      %299 = vmatpush1.msra.mxu0 0.0
      %300 = vmatprep.subr.mxu0 0.0
      %301 = vmatpush1.msra.mxu0 0.0
      %302 = vmatprep.subr.mxu0 0.0
      %303 = vmatpush1.msra.mxu0 0.0
      %304 = vmatprep.subr.mxu0 0.0
      %305 = vmatpush1.msra.mxu0 0.0
      %306 = vmatprep.subr.mxu0 0.0
      %307 = vmatpush1.msra.mxu0 0.0
      %308 = vmatprep.subr.mxu0 0.0
      %309 = vmatpush1.msra.mxu0 0.0
      %310 = vmatprep.subr.mxu0 0.0
      %311 = vmatpush1.msra.mxu0 0.0
      %312 = vmatprep.subr.mxu0 0.0
      %313 = vmatpush1.msra.mxu0 0.0
      %314 = vmatprep.subr.mxu0 0.0
      %315 = vmatpush1.msra.mxu0 0.0
      %316 = vmatprep.subr.mxu0 0.0
      %317 = vmatpush1.msra.mxu0 0.0
      %318 = vmatprep.subr.mxu0 0.0
      %319 = vmatpush1.msra.mxu0 0.0
      %320 = vmatprep.subr.mxu0 0.0
      %321 = vmatpush1.msra.mxu0 0.0
      %322 = vmatprep.subr.mxu0 0.0
      %323 = vmatpush1.msra.mxu0 %v287
      %324 = vmatprep.subr.mxu0 0.0
      %325 = vmatpush2.msra.mxu0 0.0
      %326 = vmatprep.subr.mxu0 0.0
      %327 = vmatpush2.msra.mxu0 0.0
      %328 = vmatprep.subr.mxu0 0.0
      %329 = vmatpush2.msra.mxu0 0.0
      %330 = vmatprep.subr.mxu0 0.0
      %331 = vmatpush2.msra.mxu0 0.0
      %332 = vmatprep.subr.mxu0 0.0
      %333 = vmatpush2.msra.mxu0 0.0
      %334 = vmatprep.subr.mxu0 0.0
      %335 = vmatpush2.msra.mxu0 0.0
      %336 = vmatprep.subr.mxu0 0.0
      %337 = vmatpush2.msra.mxu0 0.0
      %338 = vmatprep.subr.mxu0 0.0
      %339 = vmatpush2.msra.mxu0 0.0
      %340 = vmatprep.subr.mxu0 0.0
      %341 = vmatpush2.msra.mxu0 0.0
      %342 = vmatprep.subr.mxu0 0.0
      %343 = vmatpush2.msra.mxu0 0.0
      %344 = vmatprep.subr.mxu0 0.0
      %345 = vmatpush2.msra.mxu0 0.0
      %346 = vmatprep.subr.mxu0 0.0
      %347 = vmatpush2.msra.mxu0 0.0
      %348 = vmatprep.subr.mxu0 0.0
      %349 = vmatpush2.msra.mxu0 0.0
      %350 = vmatprep.subr.mxu0 0.0
      %351 = vmatpush2.msra.mxu0 0.0
      %352 = vmatprep.subr.mxu0 0.0
      %353 = vmatpush2.msra.mxu0 0.0
      %354 = vmatprep.subr.mxu0 0.0
      %355 = vmatpush2.msra.mxu0 0.0
      %356 = vmatprep.mubr.f32.mxu0 0.0
      %357 = vmatmul.mubr.f32.gmra.mxu0 %v290
      %v358 = vpop.f32.mrf.mxu0
      %v359 = vadd.f32 %v282, %v358
      %v360 = vpop.f32.mrf.mxu0
      %361 = vdwg.mxu0
      %v362 = vld [vmem:[%s3] sm:$0xff]
      %v363 = vld [vmem:[%s4] sm:$0xff]
      %v365 = vsel %vm288, %v362, 0
      %367 = vmatprep.subr.mxu0 0.0
      %368 = vmatpush1.msra.mxu0 0.0
      %369 = vmatprep.subr.mxu0 0.0
      %370 = vmatpush1.msra.mxu0 0.0
      %371 = vmatprep.subr.mxu0 0.0
      %372 = vmatpush1.msra.mxu0 0.0
      %373 = vmatprep.subr.mxu0 0.0
      %374 = vmatpush1.msra.mxu0 0.0
      %375 = vmatprep.subr.mxu0 0.0
      %376 = vmatpush1.msra.mxu0 0.0
      %377 = vmatprep.subr.mxu0 0.0
      %378 = vmatpush1.msra.mxu0 0.0
      %379 = vmatprep.subr.mxu0 0.0
      %380 = vmatpush1.msra.mxu0 0.0
      %381 = vmatprep.subr.mxu0 0.0
      %382 = vmatpush1.msra.mxu0 0.0
      %383 = vmatprep.subr.mxu0 0.0
      %384 = vmatpush1.msra.mxu0 0.0
      %385 = vmatprep.subr.mxu0 0.0
      %386 = vmatpush1.msra.mxu0 0.0
      %387 = vmatprep.subr.mxu0 0.0
      %388 = vmatpush1.msra.mxu0 0.0
      %389 = vmatprep.subr.mxu0 0.0
      %390 = vmatpush1.msra.mxu0 0.0
      %391 = vmatprep.subr.mxu0 0.0
      %392 = vmatpush1.msra.mxu0 0.0
      %393 = vmatprep.subr.mxu0 0.0
      %394 = vmatpush1.msra.mxu0 0.0
      %395 = vmatprep.subr.mxu0 0.0
      %396 = vmatpush1.msra.mxu0 0.0
      %397 = vmatprep.subr.mxu0 0.0
      %398 = vmatpush1.msra.mxu0 %v359
      %399 = vmatprep.subr.mxu0 0.0
      %400 = vmatpush2.msra.mxu0 0.0
      %401 = vmatprep.subr.mxu0 0.0
      %402 = vmatpush2.msra.mxu0 0.0
      %403 = vmatprep.subr.mxu0 0.0
      %404 = vmatpush2.msra.mxu0 0.0
      %405 = vmatprep.subr.mxu0 0.0
      %406 = vmatpush2.msra.mxu0 0.0
      %407 = vmatprep.subr.mxu0 0.0
      %408 = vmatpush2.msra.mxu0 0.0
      %409 = vmatprep.subr.mxu0 0.0
      %410 = vmatpush2.msra.mxu0 0.0
      %411 = vmatprep.subr.mxu0 0.0
      %412 = vmatpush2.msra.mxu0 0.0
      %413 = vmatprep.subr.mxu0 0.0
      %414 = vmatpush2.msra.mxu0 0.0
      %415 = vmatprep.subr.mxu0 0.0
      %416 = vmatpush2.msra.mxu0 0.0
      %417 = vmatprep.subr.mxu0 0.0
      %418 = vmatpush2.msra.mxu0 0.0
      %419 = vmatprep.subr.mxu0 0.0
      %420 = vmatpush2.msra.mxu0 0.0
      %421 = vmatprep.subr.mxu0 0.0
      %422 = vmatpush2.msra.mxu0 0.0
      %423 = vmatprep.subr.mxu0 0.0
      %424 = vmatpush2.msra.mxu0 0.0
      %425 = vmatprep.subr.mxu0 0.0
      %426 = vmatpush2.msra.mxu0 0.0
      %427 = vmatprep.subr.mxu0 0.0
      %428 = vmatpush2.msra.mxu0 0.0
      %429 = vmatprep.subr.mxu0 0.0
      %430 = vmatpush2.msra.mxu0 0.0
      %431 = vmatprep.mubr.f32.mxu0 0.0
      %432 = vmatmul.mubr.f32.gmra.mxu0 %v365
      %v433 = vpop.f32.mrf.mxu0
      %v434 = vadd.f32 %v363, %v433
      %v435 = vpop.f32.mrf.mxu0
      %436 = vdwg.mxu0
      %v437 = vmax.f32 %v434, 0.0
      %v438 = vld [vmem:[%s5] sm:$0xff]
      %v439 = vld [vmem:[%s6] sm:$0xff]
      %v441 = vsel %vm288, %v438, 0
      %443 = vmatprep.subr.mxu0 0.0
      %444 = vmatpush1.msra.mxu0 0.0
      %445 = vmatprep.subr.mxu0 0.0
      %446 = vmatpush1.msra.mxu0 0.0
      %447 = vmatprep.subr.mxu0 0.0
      %448 = vmatpush1.msra.mxu0 0.0
      %449 = vmatprep.subr.mxu0 0.0
      %450 = vmatpush1.msra.mxu0 0.0
      %451 = vmatprep.subr.mxu0 0.0
      %452 = vmatpush1.msra.mxu0 0.0
      %453 = vmatprep.subr.mxu0 0.0
      %454 = vmatpush1.msra.mxu0 0.0
      %455 = vmatprep.subr.mxu0 0.0
      %456 = vmatpush1.msra.mxu0 0.0
      %457 = vmatprep.subr.mxu0 0.0
      %458 = vmatpush1.msra.mxu0 0.0
      %459 = vmatprep.subr.mxu0 0.0
      %460 = vmatpush1.msra.mxu0 0.0
      %461 = vmatprep.subr.mxu0 0.0
      %462 = vmatpush1.msra.mxu0 0.0
      %463 = vmatprep.subr.mxu0 0.0
      %464 = vmatpush1.msra.mxu0 0.0
      %465 = vmatprep.subr.mxu0 0.0
      %466 = vmatpush1.msra.mxu0 0.0
      %467 = vmatprep.subr.mxu0 0.0
      %468 = vmatpush1.msra.mxu0 0.0
      %469 = vmatprep.subr.mxu0 0.0
      %470 = vmatpush1.msra.mxu0 0.0
      %471 = vmatprep.subr.mxu0 0.0
      %472 = vmatpush1.msra.mxu0 0.0
      %473 = vmatprep.subr.mxu0 0.0
      %474 = vmatpush1.msra.mxu0 %v437
      %475 = vmatprep.subr.mxu0 0.0
      %476 = vmatpush2.msra.mxu0 0.0
      %477 = vmatprep.subr.mxu0 0.0
      %478 = vmatpush2.msra.mxu0 0.0
      %479 = vmatprep.subr.mxu0 0.0
      %480 = vmatpush2.msra.mxu0 0.0
      %481 = vmatprep.subr.mxu0 0.0
      %482 = vmatpush2.msra.mxu0 0.0
      %483 = vmatprep.subr.mxu0 0.0
      %484 = vmatpush2.msra.mxu0 0.0
      %485 = vmatprep.subr.mxu0 0.0
      %486 = vmatpush2.msra.mxu0 0.0
      %487 = vmatprep.subr.mxu0 0.0
      %488 = vmatpush2.msra.mxu0 0.0
      %489 = vmatprep.subr.mxu0 0.0
      %490 = vmatpush2.msra.mxu0 0.0
      %491 = vmatprep.subr.mxu0 0.0
      %492 = vmatpush2.msra.mxu0 0.0
      %493 = vmatprep.subr.mxu0 0.0
      %494 = vmatpush2.msra.mxu0 0.0
      %495 = vmatprep.subr.mxu0 0.0
      %496 = vmatpush2.msra.mxu0 0.0
      %497 = vmatprep.subr.mxu0 0.0
      %498 = vmatpush2.msra.mxu0 0.0
      %499 = vmatprep.subr.mxu0 0.0
      %500 = vmatpush2.msra.mxu0 0.0
      %501 = vmatprep.subr.mxu0 0.0
      %502 = vmatpush2.msra.mxu0 0.0
      %503 = vmatprep.subr.mxu0 0.0
      %504 = vmatpush2.msra.mxu0 0.0
      %505 = vmatprep.subr.mxu0 0.0
      %506 = vmatpush2.msra.mxu0 0.0
      %507 = vmatprep.mubr.f32.mxu0 0.0
      %508 = vmatmul.mubr.f32.gmra.mxu0 %v441
      %v509 = vpop.f32.mrf.mxu0
      %v510 = vadd.f32 %v439, %v509
      %v511 = vpop.f32.mrf.mxu0
      %512 = vdwg.mxu0
      %v513 = vxor.u32 %v510, 2147483648
      %v514 = vmul.f32 %v513, 1.442695
      %v515 = vpow.pop %v514
      %v516 = vadd.f32 %v515, 1.0
      %v517 = vrcp.pop %v516
      %v518 = vmul.f32 1.0, %v517
      %520 = vset.pattern.permute.xlu0 0
      %521 = vperm.xlu0 %520, %v282
      %v522 = vpop.permute.xlu0 %521
      %524 = vmatprep.subr.mxu0 0.0
      %525 = vmatpush1.msra.mxu0 0.0
      %526 = vmatprep.subr.mxu0 0.0
      %527 = vmatpush1.msra.mxu0 0.0
      %528 = vmatprep.subr.mxu0 0.0
      %529 = vmatpush1.msra.mxu0 0.0
      %530 = vmatprep.subr.mxu0 0.0
      %531 = vmatpush1.msra.mxu0 0.0
      %532 = vmatprep.subr.mxu0 0.0
      %533 = vmatpush1.msra.mxu0 0.0
      %534 = vmatprep.subr.mxu0 0.0
      %535 = vmatpush1.msra.mxu0 0.0
      %536 = vmatprep.subr.mxu0 0.0
      %537 = vmatpush1.msra.mxu0 0.0
      %538 = vmatprep.subr.mxu0 0.0
      %539 = vmatpush1.msra.mxu0 0.0
      %540 = vmatprep.subr.mxu0 0.0
      %541 = vmatpush1.msra.mxu0 0.0
      %542 = vmatprep.subr.mxu0 0.0
      %543 = vmatpush1.msra.mxu0 0.0
      %544 = vmatprep.subr.mxu0 0.0
      %545 = vmatpush1.msra.mxu0 0.0
      %546 = vmatprep.subr.mxu0 0.0
      %547 = vmatpush1.msra.mxu0 0.0
      %548 = vmatprep.subr.mxu0 0.0
      %549 = vmatpush1.msra.mxu0 0.0
      %550 = vmatprep.subr.mxu0 0.0
      %551 = vmatpush1.msra.mxu0 0.0
      %552 = vmatprep.subr.mxu0 0.0
      %553 = vmatpush1.msra.mxu0 0.0
      %554 = vmatprep.subr.mxu0 %v280
      %555 = vmatpush1.msra.mxu0 %v279
      %556 = vmatprep.subr.mxu0 0.0
      %557 = vmatpush2.msra.mxu0 0.0
      %558 = vmatprep.subr.mxu0 0.0
      %559 = vmatpush2.msra.mxu0 0.0
      %560 = vmatprep.subr.mxu0 0.0
      %561 = vmatpush2.msra.mxu0 0.0
      %562 = vmatprep.subr.mxu0 0.0
      %563 = vmatpush2.msra.mxu0 0.0
      %564 = vmatprep.subr.mxu0 0.0
      %565 = vmatpush2.msra.mxu0 0.0
      %566 = vmatprep.subr.mxu0 0.0
      %567 = vmatpush2.msra.mxu0 0.0
      %568 = vmatprep.subr.mxu0 0.0
      %569 = vmatpush2.msra.mxu0 0.0
      %570 = vmatprep.subr.mxu0 0.0
      %571 = vmatpush2.msra.mxu0 0.0
      %572 = vmatprep.subr.mxu0 0.0
      %573 = vmatpush2.msra.mxu0 0.0
      %574 = vmatprep.subr.mxu0 0.0
      %575 = vmatpush2.msra.mxu0 0.0
      %576 = vmatprep.subr.mxu0 0.0
      %577 = vmatpush2.msra.mxu0 0.0
      %578 = vmatprep.subr.mxu0 0.0
      %579 = vmatpush2.msra.mxu0 0.0
      %580 = vmatprep.subr.mxu0 0.0
      %581 = vmatpush2.msra.mxu0 0.0
      %582 = vmatprep.subr.mxu0 0.0
      %583 = vmatpush2.msra.mxu0 0.0
      %584 = vmatprep.subr.mxu0 0.0
      %585 = vmatpush2.msra.mxu0 0.0
      %586 = vmatprep.subr.mxu0 0.0
      %587 = vmatpush2.msra.mxu0 0.0
      %588 = vmatprep.mubr.f32.mxu0 0.0
      %589 = vmatmul.mubr.f32.gmra.mxu0 %v290
      %v590 = vpop.f32.mrf.mxu0
      %v591 = vadd.f32 %v522, %v590
      %v592 = vpop.f32.mrf.mxu0
      %v593 = vadd.f32 %v522, %v592
      %594 = vdwg.mxu0
      %596 = vset.pattern.permute.xlu0 0
      %597 = vperm.xlu0 %596, %v518
      %v598 = vpop.permute.xlu0 %597
      %v600 = vmul.f32 %v598, %v591
      %v601 = vmul.f32 %v598, %v593
      %602 = vst [vmem:[%s278] sm:$0xff] %v600
      %603 = vst [vmem:[%s278 + $0x8] sm:$0xff] %v601
      %p604 = scmp.lt.s32.totalorder %s18, 1
      %s605 = scalar_select %p604, %s18, 1
      %s606 = smul.addr %s605, 2
      %s607 = smul.addr %s606, 8
      %s608 = scalar_lea.vmem %s7, %s607
      // Predicated region
      $region49: #{weight_block.1} parent=47 // pred_check
        %p609 = pneg %p188
      $region50: #{weight_block.1} parent=47 // pred_check_branch
        %611 = sbr.rel (%p609) target = $region52
      $region51: #{weight_block.1} parent=47 // pred_region
        _
      $region52: #{weight_block.1} parent=47 // pred_fallthru
        _
    $region48: #{weight_block.1} parent=5 // pred_fallthru
      _
    %p612 = scmp.le.s32.totalorder 2, %s13
    // Predicated region
    $region53: #{weight_block.1} parent=5 // pred_check
      %p613 = pneg %p612
    $region54: #{weight_block.1} parent=5 // pred_check_branch
      %615 = sbr.rel (%p613) target = $region56
    $region55: #{weight_block.1} parent=5 // pred_region
      %s616 = ssub.s32 %s13, 2
      // Predicated region
      $region57: #{weight_block.1} parent=55 // pred_check
        %p617 = pneg %p194
      $region58: #{weight_block.1} parent=55 // pred_check_branch
        %619 = sbr.rel (%p617) target = $region60
      $region59: #{weight_block.1} parent=55 // pred_region
        %p620 = scmp.lt.s32.totalorder %s19, 1
        %s621 = scalar_select %p620, %s19, 1
        %s622 = smul.addr %s621, 2
        %s623 = smul.addr %s622, 8
        %s624 = scalar_lea.vmem %s7, %s623
      $region60: #{weight_block.1} parent=55 // pred_fallthru
        _
    $region56: #{weight_block.1} parent=5 // pred_fallthru
      _
  $region6: #{weight_block.1} parent=0 // loop_footer
    %s17 = sadd.s32 1, %s13
  $region7: #{weight_block.1} parent=0 // loop_footer_branch
    %12 = sbr.rel target = $region3
  $region8: #{weight_block.1} parent=0 // loop_exit
    _

</llo_original>
